<compile_context>
chip_gen: v5e
topology: v5e:2x2
jax: 0.10.0
libtpu: 0.0.40
codegen_flags: <defaults>
</compile_context>

<pallas_src>
import functools

import jax
import jax.numpy as jnp
from jax.experimental import pallas as pl
from jax.experimental.pallas import tpu as pltpu


def basic_block_kernel(xr_ref, xc_ref, a_ref, w_ref, b_ref, o_ref, acc_ref):
    # xr_ref:  (Bt, N, D)   full rows (identity term), constant over k
    # xc_ref:  (Bt, Tm, D)  contraction slice of x for this k tile
    # a_ref:   (Bt, N, Tm)  adjacency tile (lane-dense m axis)
    # w_ref:   (2D, F_pad)  f32 weights, single-buffered
    # b_ref:   (1, F_pad)   f32 bias, single-buffered
    # o_ref:   (Bt, N, F_pad)
    # acc_ref: (Bt, N, D)   f32 aggregation accumulator (VMEM scratch)
    k = pl.program_id(1)
    nk = pl.num_programs(1)
    bt, n, d = xr_ref.shape
    f_pad = o_ref.shape[-1]

    @pl.when(k == 0)
    def _():
        acc_ref[...] = jnp.zeros_like(acc_ref)

    # Partial neighborhood aggregation: acc += adj[:, :, k-tile] @ x[k-tile]
    acc_ref[...] += jnp.einsum(
        "bnm,bmd->bnd", a_ref[...], xc_ref[...],
        preferred_element_type=jnp.float32)

    @pl.when(k == nk - 1)
    def _():
        # Row-stacked GraphConv matmul:
        #   cat @ W == x @ W[:D] + agg @ W[D:]   (avoids an in-kernel lane concat)
        # Stacking Bt*N rows gives one MXU push per weight half.  N % 8 == 0 is
        # asserted in the wrapper so these reshapes are free views.
        rows_x = xr_ref[...].astype(jnp.float32).reshape(bt * n, d)
        rows_agg = acc_ref[...].reshape(bt * n, d)          # f32, no bf16 recast
        w_top = w_ref[:d, :]
        w_bot = w_ref[d:, :]
        out = (jnp.dot(rows_x, w_top, preferred_element_type=jnp.float32)
               + jnp.dot(rows_agg, w_bot, preferred_element_type=jnp.float32))
        out = out + b_ref[...]                               # bias once per tile
        out = jnp.maximum(out, 0.0)                          # GraphConv ReLU;
        #                                                      BasicBlock ReLU idempotent
        o_ref[...] = out.reshape(bt, n, f_pad).astype(o_ref.dtype)


def prepare_params(weight, bias):
    """One-time padding to a lane-dense feature dim (hoisted out of forward)."""
    two_d, f_out = weight.shape
    f_pad = ((f_out + 127) // 128) * 128
    w_pad = jnp.zeros((two_d, f_pad), jnp.float32)
    w_pad = w_pad.at[:, :f_out].set(weight.astype(jnp.float32))
    b_pad = jnp.zeros((1, f_pad), jnp.float32)
    b_pad = b_pad.at[0, :f_out].set(bias.astype(jnp.float32))
    return w_pad, b_pad, f_out


def _pick_tiles(B, N, D, F_pad, x_bytes, a_bytes, o_bytes,
                budget_bytes=24 << 20):
    """Batch / contraction tile sizes under an explicit VMEM budget."""
    # Contraction tile over adj's m axis: >=512-wide and a multiple of 128
    # when N is large (lane-dense streaming ~85% of HBM roofline); otherwise
    # a single contraction step.
    if N <= 512:
        tm = N
    else:
        tm = N
        for cand in (512, 1024, 256, 128):
            if N % cand == 0:
                tm = cand
                break

    def footprint(bt):
        return (2 * bt * N * tm * a_bytes          # adj tile (double-buffered)
                + 2 * bt * tm * D * x_bytes        # x contraction slice
                + 2 * bt * N * D * x_bytes         # x rows
                + 2 * bt * N * F_pad * o_bytes     # output tile
                + bt * N * D * 4                   # f32 accumulator scratch
                + 2 * D * F_pad * 4 + F_pad * 4)   # weight + bias (single-buffered)

    # Prefer >=2 batch grid steps when B > 1 (pipeline overlap, v7x megacore),
    # then shrink until the footprint fits the budget.
    if B == 1:
        bt = 1
    else:
        bt = max(d for d in range(1, B // 2 + 1) if B % d == 0)
    while bt > 1 and footprint(bt) > budget_bytes:
        bt = max(d for d in range(1, bt) if B % d == 0)
    # TODO(synk): if footprint(1) still exceeds the budget (huge N), tile the
    # output row axis as well.
    return bt, tm


def basic_block_forward(x, adj, w_pad, b_pad, *, f_out=None,
                        batch_tile=None, out_dtype=None):
    """x: (B, N, D), adj: (B, N, N), w_pad: (2D, F_pad) f32, b_pad: (1, F_pad) f32.

    x / adj may be f32 or bf16 (bf16 halves the dominant adj HBM traffic).
    out_dtype=jnp.bfloat16 halves writeback bytes (largest win on v5e).
    """
    B, N, D = x.shape
    assert adj.shape == (B, N, N)
    two_d, F_pad = w_pad.shape
    assert two_d == 2 * D and F_pad % 128 == 0
    # Keeps the in-kernel (Bt, N, D) <-> (Bt*N, D) reshapes free views
    # (use a multiple of 16 for bf16 activations).
    assert N % 8 == 0, "N must be a multiple of the sublane tile (8)"
    out_dtype = x.dtype if out_dtype is None else jnp.dtype(out_dtype)

    x_bytes = x.dtype.itemsize
    a_bytes = adj.dtype.itemsize
    o_bytes = jnp.dtype(out_dtype).itemsize

    bt, tm = _pick_tiles(B, N, D, F_pad, x_bytes, a_bytes, o_bytes)
    if batch_tile is not None:
        bt = batch_tile
    assert B % bt == 0 and N % tm == 0
    nk = N // tm

    flops = 2 * B * N * N * D + 2 * B * N * (2 * D) * F_pad
    bytes_accessed = (x.size * x_bytes + adj.size * a_bytes
                      + w_pad.size * 4 + b_pad.size * 4
                      + B * N * F_pad * o_bytes)

    out_pad = pl.pallas_call(
        basic_block_kernel,
        out_shape=jax.ShapeDtypeStruct((B, N, F_pad), out_dtype),
        grid_spec=pltpu.PrefetchScalarGridSpec(
            num_scalar_prefetch=0,
            grid=(B // bt, nk),
            in_specs=[
                # full x rows for the identity term (constant over k)
                pl.BlockSpec((bt, N, D), lambda b, k: (b, 0, 0)),
                # contraction slice of x for this k tile
                pl.BlockSpec((bt, tm, D), lambda b, k: (b, k, 0)),
                # lane-dense adjacency tile
                pl.BlockSpec((bt, N, tm), lambda b, k: (b, 0, k)),
                # grid-invariant weights / bias: single-buffered
                pl.BlockSpec((2 * D, F_pad), lambda b, k: (0, 0),
                             pipeline_mode=pl.Buffered(1)),
                pl.BlockSpec((1, F_pad), lambda b, k: (0, 0),
                             pipeline_mode=pl.Buffered(1)),
            ],
            out_specs=pl.BlockSpec((bt, N, F_pad), lambda b, k: (b, 0, 0)),
            scratch_shapes=[pltpu.VMEM((bt, N, D), jnp.float32)],
        ),
        compiler_params=pltpu.CompilerParams(
            dimension_semantics=("parallel", "arbitrary"),
            vmem_limit_bytes=32 * 1024 * 1024),
        cost_estimate=pl.CostEstimate(
            flops=flops, transcendentals=0, bytes_accessed=bytes_accessed),
    )(x, x, adj, w_pad, b_pad)

    if f_out is None or f_out == F_pad:
        return out_pad
    return out_pad[..., :f_out]


def reference_forward(x, adj, weight, bias):
    agg = jnp.einsum("bnm,bmd->bnd", adj, x)
    cat = jnp.concatenate([x, agg], axis=-1)
    out = jnp.einsum("bnd,df->bnf", cat, weight) + bias
    out = jnp.maximum(out, 0.0)        # GraphConv relu
    return jnp.maximum(out, 0.0)       # BasicBlock relu


def xavier_uniform(key, shape, dtype=jnp.float32):
    fan_in, fan_out = shape
    limit = (6.0 / (fan_in + fan_out)) ** 0.5
    return jax.random.uniform(key, shape, dtype, minval=-limit, maxval=limit)


if __name__ == "__main__":
    B, N, inplanes, planes = 2, 16, 32, 32

    key = jax.random.PRNGKey(0)
    kx, ka, kw = jax.random.split(key, 3)

    x = jax.random.normal(kx, (B, N, inplanes), dtype=jnp.float32)

    # Row-normalized adjacency (mean aggregation), kept in f32 so row sums
    # stay exactly 1 (per review; pass bf16 to halve adj HBM traffic at scale).
    a_raw = jax.random.uniform(ka, (B, N, N), dtype=jnp.float32)
    adj = a_raw / jnp.sum(a_raw, axis=-1, keepdims=True)

    # GraphConv.__init__: weight (in_dim*2, out_dim) xavier_uniform, bias zeros.
    weight = xavier_uniform(kw, (inplanes * 2, planes))
    bias = jnp.zeros((planes,), dtype=jnp.float32)

    # One-time parameter padding/cast, hoisted out of the forward pass.
    w_pad, b_pad, f_out = prepare_params(weight, bias)

    fwd = jax.jit(functools.partial(basic_block_forward, f_out=f_out))
    out = jax.block_until_ready(fwd(x, adj, w_pad, b_pad))
    assert out.shape == (B, N, planes)

    # All operands stay f32, so compare tightly against the f32 reference.
    ref = reference_forward(x, adj, weight, bias)
    assert jnp.allclose(out, ref, atol=5e-3, rtol=5e-3), "mismatch vs f32 reference"

    print("KERNEL_OK")
</pallas_src>

<mosaic_0001>
module attributes {stable_mosaic.version = 11 : i64} {
  func.func @basic_block_kernel(%arg0: i32, %arg1: i32, %arg2: memref<1x16x32xf32, #tpu.memory_space<vmem>>, %arg3: memref<1x16x32xf32, #tpu.memory_space<vmem>>, %arg4: memref<1x16x16xf32, #tpu.memory_space<vmem>>, %arg5: memref<64x128xf32, #tpu.memory_space<vmem>>, %arg6: memref<1x128xf32, #tpu.memory_space<vmem>>, %arg7: memref<1x16x128xf32, #tpu.memory_space<vmem>>, %arg8: memref<1x16x32xf32, #tpu.memory_space<vmem>>) attributes {dimension_semantics = [#tpu.dimension_semantics<parallel>, #tpu.dimension_semantics<arbitrary>], iteration_bounds = array<i64: 2, 1>, scalar_prefetch = 0 : i64, scratch_operands = 1 : i64, tpu.core_type = #tpu.core_type<tc>, window_params = [{transform_indices = @transform_0, window_bounds = array<i64: 1, 16, 32>}, {transform_indices = @transform_1, window_bounds = array<i64: 1, 16, 32>}, {transform_indices = @transform_2, window_bounds = array<i64: 1, 16, 16>}, {pipeline_mode = #tpu.pipeline_mode<synchronous>, transform_indices = @transform_3, window_bounds = array<i64: 64, 128>}, {pipeline_mode = #tpu.pipeline_mode<synchronous>, transform_indices = @transform_4, window_bounds = array<i64: 1, 128>}, {transform_indices = @transform_5, window_bounds = array<i64: 1, 16, 128>}]} {
    %c0_i32 = arith.constant 0 : i32
    %0 = arith.cmpi eq, %arg1, %c0_i32 : i32
    %1 = arith.extui %0 : i1 to i32
    %c0_i32_0 = arith.constant 0 : i32
    %2 = arith.cmpi ne, %1, %c0_i32_0 : i32
    scf.if %2 {
      %cst_14 = arith.constant 0.000000e+00 : f32
      %12 = vector.broadcast %cst_14 : f32 to vector<1x16x32xf32>
      %c0_15 = arith.constant 0 : index
      %c0_16 = arith.constant 0 : index
      %c0_17 = arith.constant 0 : index
      %13 = vector.load %arg8[%c0_15, %c0_16, %c0_17] : memref<1x16x32xf32, #tpu.memory_space<vmem>>, vector<1x16x32xf32>
      tpu.vector_store %arg8[%c0_15, %c0_16, %c0_17], %12 {strides = array<i32>} : memref<1x16x32xf32, #tpu.memory_space<vmem>>, vector<1x16x32xf32>,
    } else {
    }
    %c0 = arith.constant 0 : index
    %c0_1 = arith.constant 0 : index
    %c0_2 = arith.constant 0 : index
    %3 = vector.load %arg8[%c0, %c0_1, %c0_2] : memref<1x16x32xf32, #tpu.memory_space<vmem>>, vector<1x16x32xf32>
    %c0_3 = arith.constant 0 : index
    %c0_4 = arith.constant 0 : index
    %c0_5 = arith.constant 0 : index
    %4 = vector.load %arg4[%c0_3, %c0_4, %c0_5] : memref<1x16x16xf32, #tpu.memory_space<vmem>>, vector<1x16x16xf32>
    %c0_6 = arith.constant 0 : index
    %c0_7 = arith.constant 0 : index
    %c0_8 = arith.constant 0 : index
    %5 = vector.load %arg3[%c0_6, %c0_7, %c0_8] : memref<1x16x32xf32, #tpu.memory_space<vmem>>, vector<1x16x32xf32>
    "tpu.trace_start"() <{level = 10 : i32, message = "bnm,bmd->bnd"}> : () -> ()
    %cst = arith.constant dense<0.000000e+00> : vector<1x16x32xf32>
    %6 = tpu.matmul %4, %5, %cst {dimension_numbers = #tpu.dot_dimension_numbers<[2], [1], [1], [2], [0, 0, 0, 1, 1, 2], [0], [0]>} : vector<1x16x16xf32>, vector<1x16x32xf32>, vector<1x16x32xf32> -> vector<1x16x32xf32>
    "tpu.trace_stop"() : () -> ()
    %7 = arith.addf %3, %6 : vector<1x16x32xf32>
    %c0_9 = arith.constant 0 : index
    %c0_10 = arith.constant 0 : index
    %c0_11 = arith.constant 0 : index
    %8 = vector.load %arg8[%c0_9, %c0_10, %c0_11] : memref<1x16x32xf32, #tpu.memory_space<vmem>>, vector<1x16x32xf32>
    tpu.vector_store %arg8[%c0_9, %c0_10, %c0_11], %7 {strides = array<i32>} : memref<1x16x32xf32, #tpu.memory_space<vmem>>, vector<1x16x32xf32>,
    %c0_i32_12 = arith.constant 0 : i32
    %9 = arith.cmpi eq, %arg1, %c0_i32_12 : i32
    %10 = arith.extui %9 : i1 to i32
    %c0_i32_13 = arith.constant 0 : i32
    %11 = arith.cmpi ne, %10, %c0_i32_13 : i32
    scf.if %11 {
      %c0_14 = arith.constant 0 : index
      %c0_15 = arith.constant 0 : index
      %c0_16 = arith.constant 0 : index
      %12 = vector.load %arg2[%c0_14, %c0_15, %c0_16] : memref<1x16x32xf32, #tpu.memory_space<vmem>>, vector<1x16x32xf32>
      %13 = vector.shape_cast %12 : vector<1x16x32xf32> to vector<16x32xf32>
      %c0_17 = arith.constant 0 : index
      %c0_18 = arith.constant 0 : index
      %c0_19 = arith.constant 0 : index
      %14 = vector.load %arg8[%c0_17, %c0_18, %c0_19] : memref<1x16x32xf32, #tpu.memory_space<vmem>>, vector<1x16x32xf32>
      %15 = vector.shape_cast %14 : vector<1x16x32xf32> to vector<16x32xf32>
      %c0_20 = arith.constant 0 : index
      %c0_21 = arith.constant 0 : index
      %16 = vector.load %arg5[%c0_20, %c0_21] : memref<64x128xf32, #tpu.memory_space<vmem>>, vector<32x128xf32>
      %c32 = arith.constant 32 : index
      %c0_22 = arith.constant 0 : index
      %17 = vector.load %arg5[%c32, %c0_22] : memref<64x128xf32, #tpu.memory_space<vmem>>, vector<32x128xf32>
      %cst_23 = arith.constant dense<0.000000e+00> : vector<16x128xf32>
      %18 = tpu.matmul %13, %16, %cst_23 {dimension_numbers = #tpu.dot_dimension_numbers<[1], [0], [0], [1], [0, 0, 1, 1], [], []>} : vector<16x32xf32>, vector<32x128xf32>, vector<16x128xf32> -> vector<16x128xf32>
      %cst_24 = arith.constant dense<0.000000e+00> : vector<16x128xf32>
      %19 = tpu.matmul %15, %17, %cst_24 {dimension_numbers = #tpu.dot_dimension_numbers<[1], [0], [0], [1], [0, 0, 1, 1], [], []>} : vector<16x32xf32>, vector<32x128xf32>, vector<16x128xf32> -> vector<16x128xf32>
      %20 = arith.addf %18, %19 : vector<16x128xf32>
      %c0_25 = arith.constant 0 : index
      %c0_26 = arith.constant 0 : index
      %21 = vector.load %arg6[%c0_25, %c0_26] : memref<1x128xf32, #tpu.memory_space<vmem>>, vector<1x128xf32>
      %22 = vector.broadcast %21 : vector<1x128xf32> to vector<16x128xf32>
      %23 = arith.addf %20, %22 : vector<16x128xf32>
      %cst_27 = arith.constant 0.000000e+00 : f32
      %24 = vector.broadcast %cst_27 : f32 to vector<16x128xf32>
      %25 = arith.maximumf %23, %24 : vector<16x128xf32>
      %26 = vector.shape_cast %25 : vector<16x128xf32> to vector<1x16x128xf32>
      %c0_28 = arith.constant 0 : index
      %c0_29 = arith.constant 0 : index
      %c0_30 = arith.constant 0 : index
      %27 = vector.load %arg7[%c0_28, %c0_29, %c0_30] : memref<1x16x128xf32, #tpu.memory_space<vmem>>, vector<1x16x128xf32>
      tpu.vector_store %arg7[%c0_28, %c0_29, %c0_30], %26 {strides = array<i32>} : memref<1x16x128xf32, #tpu.memory_space<vmem>>, vector<1x16x128xf32>,
    } else {
    }
    return
  }
  func.func @transform_0(%arg0: i32, %arg1: i32) -> (i32, i32, i32) {
    %c0_i32 = arith.constant 0 : i32
    %c0_i32_0 = arith.constant 0 : i32
    %c0_i32_1 = arith.constant 0 : i32
    return %arg0, %c0_i32, %c0_i32_0 : i32, i32, i32
  }
  func.func @transform_1(%arg0: i32, %arg1: i32) -> (i32, i32, i32) {
    %c0_i32 = arith.constant 0 : i32
    %c0_i32_0 = arith.constant 0 : i32
    return %arg0, %arg1, %c0_i32 : i32, i32, i32
  }
  func.func @transform_2(%arg0: i32, %arg1: i32) -> (i32, i32, i32) {
    %c0_i32 = arith.constant 0 : i32
    %c0_i32_0 = arith.constant 0 : i32
    return %arg0, %c0_i32, %arg1 : i32, i32, i32
  }
  func.func @transform_3(%arg0: i32, %arg1: i32) -> (i32, i32) {
    %c0_i32 = arith.constant 0 : i32
    %c0_i32_0 = arith.constant 0 : i32
    %c0_i32_1 = arith.constant 0 : i32
    return %c0_i32, %c0_i32_0 : i32, i32
  }
  func.func @transform_4(%arg0: i32, %arg1: i32) -> (i32, i32) {
    %c0_i32 = arith.constant 0 : i32
    %c0_i32_0 = arith.constant 0 : i32
    %c0_i32_1 = arith.constant 0 : i32
    return %c0_i32, %c0_i32_0 : i32, i32
  }
  func.func @transform_5(%arg0: i32, %arg1: i32) -> (i32, i32, i32) {
    %c0_i32 = arith.constant 0 : i32
    %c0_i32_0 = arith.constant 0 : i32
    %c0_i32_1 = arith.constant 0 : i32
    return %arg0, %c0_i32, %c0_i32_0 : i32, i32, i32
  }
}

</mosaic_0001>

<llo_original>
// kernel: basic_block_forward.1
$region0: #{basic_block_forward.1}
  #allocation0 [shape = 'u32[]', space=smem, size = 0x4, offset = 0x4, fixed_abs, tag = 'smem constant byte address 0x4 - core index']
  #allocation1 [shape = 'u32[72,128]{1,0:T(1,128)}', space=vmem, size = 0x9000, scoped, tag = 'internal scratch']
  #allocation2 [shape = 'f32[1,16,32]{2,1,0:T(8,128)}', space=vmem, size = 0x2000, scoped, tag = 'scratch operand']
  %s0 = inlined_call_operand.hbm [shape: f32[2,16,32], index: 0, kind: input, shape index: {}, may-alias: {0,1}]
  %s1 = inlined_call_operand.hbm [shape: f32[2,16,32], index: 1, kind: input, shape index: {}, may-alias: {0,1}]
  %s2 = inlined_call_operand.hbm [shape: f32[2,16,16], index: 2, kind: input, shape index: {}]
  %s3 = inlined_call_operand.hbm [shape: f32[64,128], index: 3, kind: input, shape index: {}]
  %s4 = inlined_call_operand.vmem [shape: f32[1,128], index: 4, kind: input, shape index: {}]
  %s5 = inlined_call_operand.hbm [shape: f32[2,16,128], index: 5, kind: output, shape index: {}]
  %s6 = sld [smem:[#allocation0]]
  $region77: #{basic_block_forward.1} parent=0
    _
  %s8 = ssub.s32 1, %s6
  %s9 = scalar_select 0, %s8, %s6
  $region1: #{basic_block_forward.1} parent=0
    #allocation3 [shape = 'u8[16384]{0}', space=vmem, size = 0x4000, scoped, tag = 'input window, operand 0']
    #allocation4 [shape = 's32[2]{0}', space=sflag, size = 0x8, scoped, tag = 'scoped memory for basic_block_forward.1']
    #allocation5 [shape = 's32[2]{0}', space=sflag, size = 0x8, scoped, tag = 'scoped memory for basic_block_forward.1']
    #allocation6 [shape = 'u8[16384]{0}', space=vmem, size = 0x4000, scoped, tag = 'input window, operand 1']
    #allocation7 [shape = 's32[2]{0}', space=sflag, size = 0x8, scoped, tag = 'scoped memory for basic_block_forward.1']
    #allocation8 [shape = 'u8[16384]{0}', space=vmem, size = 0x4000, scoped, tag = 'input window, operand 2']
    #allocation9 [shape = 'u8[32768]{0}', space=vmem, size = 0x8000, scoped, tag = 'input window, operand 3, single buffered']
    #allocation10 [shape = 's32[1]{0}', space=sflag, size = 0x4, scoped, tag = 'scoped memory for basic_block_forward.1']
    #allocation11 [shape = 'u8[16384]{0}', space=vmem, size = 0x4000, scoped, tag = 'output window, operand 0']
    %10 = vsyncpa [#allocation4], 0
    %s11 = scalar_lea.sflag [#allocation4], 1
    %12 = vsyncpa %s11, 0
    %13 = vsyncpa [#allocation7], 0
    %s14 = scalar_lea.sflag [#allocation7], 1
    %15 = vsyncpa %s14, 0
    %16 = vsyncpa [#allocation10], 0
    %17 = vsyncpa [#allocation5], 0
    %s18 = scalar_lea.sflag [#allocation5], 1
    %19 = vsyncpa %s18, 0
    loop: start=0, step=1, limit=4
    $region2: #{basic_block_forward.1} parent=1 // loop_pre_header
      _
    $region3: #{basic_block_forward.1} parent=1 // loop_header
      %s21 = sphi 0, %s25
      %p22 = scmp.ge.s32.totalorder %s21, 4
      %s28 = sphi 0, %s40
      %s29 = sphi 0, %s36
      %s30 = sphi 0, %s28
      %s31 = sphi 0, %s29
      %s32 = sphi 0, %s30
      %s33 = sphi 0, %s31
      %s43 = sphi 0, %s45
      %s46 = sphi 0, %s43
      %s47 = sphi 0, %s46
      %s63 = sphi 0, %s47
      %s71 = sphi 0, %s73
      %s74 = sphi 0, %s71
      %s75 = sphi 0, %s74
      %s91 = sphi 0, %s75
      %s99 = sphi 0, %s101
      %s102 = sphi 0, %s99
      %s103 = sphi 0, %s102
      %s119 = sphi 0, %s103
      %s123 = sphi 0, %s123
      %s125 = sphi 0, %s123
      %s126 = sphi 0, %s125
      %s140 = sphi 0, %s126
      %s144 = sphi 0, %s144
      %s146 = sphi 0, %s144
      %s147 = sphi 0, %s146
      %s161 = sphi 0, %s147
      %s167 = sphi 0, %s169
      %s170 = sphi 0, %s167
      %s171 = sphi 0, %s170
      %s187 = sphi 0, %s171
    $region4: #{basic_block_forward.1} parent=1 // loop_header_branch
      %24 = sbr.rel (%p22) target = $region8
    $region5: #{basic_block_forward.1} parent=1 // loop_body
      %s26 = ssub.s32 %s21, 1
      %s27 = ssub.s32 %s21, 2
      %s34 = sadd.s32 1, %s29
      %p35 = scmp.ge.s32.totalorder %s34, 1
      %s36 = scalar_select %p35, 0, %s34
      %s37 = sadd.s32 1, %s28
      %s38 = scalar_select %p35, %s37, %s28
      %p39 = scmp.ge.s32.totalorder %s38, 2
      %s40 = scalar_select %p39, 0, %s38
      %s41 = ssub.s32 %s28, %s40
      %p42 = scmp.eq.s32.totalorder %s41, 0
      %s44 = sadd.s32 %s43, 1
      %s45 = scalar_select %p42, %s43, %s44
      %p48 = pneg %p42
      %p49 = scmp.eq.s32.totalorder %s21, 1
      %p50 = por %p48, %p49
      %p51 = scmp.ne.s32.totalorder %s43, %s46
      %p52 = scmp.eq.s32.totalorder %s21, 0
      %p53 = por %p51, %p52
      %p54 = scmp.ne.s32.totalorder %s43, %s46
      %p55 = scmp.eq.s32.totalorder %s26, 1
      %p56 = por %p54, %p55
      %p57 = scmp.ne.s32.totalorder %s46, %s47
      %p58 = scmp.eq.s32.totalorder %s26, 0
      %p59 = por %p57, %p58
      %p60 = scmp.ne.s32.totalorder %s46, %s47
      %p61 = scmp.eq.s32.totalorder %s27, 1
      %p62 = por %p60, %p61
      %p64 = scmp.ne.s32.totalorder %s47, %s63
      %p65 = scmp.eq.s32.totalorder %s27, 0
      %p66 = por %p64, %p65
      %s67 = ssub.s32 %s28, %s40
      %s68 = ssub.s32 %s29, %s36
      %s69 = sor.u32 %s67, %s68
      %p70 = scmp.eq.s32.totalorder %s69, 0
      %s72 = sadd.s32 %s71, 1
      %s73 = scalar_select %p70, %s71, %s72
      %p76 = pneg %p70
      %p77 = scmp.eq.s32.totalorder %s21, 1
      %p78 = por %p76, %p77
      %p79 = scmp.ne.s32.totalorder %s71, %s74
      %p80 = scmp.eq.s32.totalorder %s21, 0
      %p81 = por %p79, %p80
      %p82 = scmp.ne.s32.totalorder %s71, %s74
      %p83 = scmp.eq.s32.totalorder %s26, 1
      %p84 = por %p82, %p83
      %p85 = scmp.ne.s32.totalorder %s74, %s75
      %p86 = scmp.eq.s32.totalorder %s26, 0
      %p87 = por %p85, %p86
      %p88 = scmp.ne.s32.totalorder %s74, %s75
      %p89 = scmp.eq.s32.totalorder %s27, 1
      %p90 = por %p88, %p89
      %p92 = scmp.ne.s32.totalorder %s75, %s91
      %p93 = scmp.eq.s32.totalorder %s27, 0
      %p94 = por %p92, %p93
      %s95 = ssub.s32 %s28, %s40
      %s96 = ssub.s32 %s29, %s36
      %s97 = sor.u32 %s95, %s96
      %p98 = scmp.eq.s32.totalorder %s97, 0
      %s100 = sadd.s32 %s99, 1
      %s101 = scalar_select %p98, %s99, %s100
      %p104 = pneg %p98
      %p105 = scmp.eq.s32.totalorder %s21, 1
      %p106 = por %p104, %p105
      %p107 = scmp.ne.s32.totalorder %s99, %s102
      %p108 = scmp.eq.s32.totalorder %s21, 0
      %p109 = por %p107, %p108
      %p110 = scmp.ne.s32.totalorder %s99, %s102
      %p111 = scmp.eq.s32.totalorder %s26, 1
      %p112 = por %p110, %p111
      %p113 = scmp.ne.s32.totalorder %s102, %s103
      %p114 = scmp.eq.s32.totalorder %s26, 0
      %p115 = por %p113, %p114
      %p116 = scmp.ne.s32.totalorder %s102, %s103
      %p117 = scmp.eq.s32.totalorder %s27, 1
      %p118 = por %p116, %p117
      %p120 = scmp.ne.s32.totalorder %s103, %s119
      %p121 = scmp.eq.s32.totalorder %s27, 0
      %p122 = por %p120, %p121
      %s124 = sadd.s32 %s123, 1
      %p127 = scmp.eq.s32.totalorder %s21, 1
      %p128 = scmp.ne.s32.totalorder %s123, %s125
      %p129 = scmp.eq.s32.totalorder %s21, 0
      %p130 = por %p128, %p129
      %p131 = scmp.ne.s32.totalorder %s123, %s125
      %p132 = scmp.eq.s32.totalorder %s26, 1
      %p133 = por %p131, %p132
      %p134 = scmp.ne.s32.totalorder %s125, %s126
      %p135 = scmp.eq.s32.totalorder %s26, 0
      %p136 = por %p134, %p135
      %p137 = scmp.ne.s32.totalorder %s125, %s126
      %p138 = scmp.eq.s32.totalorder %s27, 1
      %p139 = por %p137, %p138
      %p141 = scmp.ne.s32.totalorder %s126, %s140
      %p142 = scmp.eq.s32.totalorder %s27, 0
      %p143 = por %p141, %p142
      %s145 = sadd.s32 %s144, 1
      %p148 = scmp.eq.s32.totalorder %s21, 1
      %p149 = scmp.ne.s32.totalorder %s144, %s146
      %p150 = scmp.eq.s32.totalorder %s21, 0
      %p151 = por %p149, %p150
      %p152 = scmp.ne.s32.totalorder %s144, %s146
      %p153 = scmp.eq.s32.totalorder %s26, 1
      %p154 = por %p152, %p153
      %p155 = scmp.ne.s32.totalorder %s146, %s147
      %p156 = scmp.eq.s32.totalorder %s26, 0
      %p157 = por %p155, %p156
      %p158 = scmp.ne.s32.totalorder %s146, %s147
      %p159 = scmp.eq.s32.totalorder %s27, 1
      %p160 = por %p158, %p159
      %p162 = scmp.ne.s32.totalorder %s147, %s161
      %p163 = scmp.eq.s32.totalorder %s27, 0
      %p164 = por %p162, %p163
      %s165 = ssub.s32 %s28, %s40
      %p166 = scmp.eq.s32.totalorder %s165, 0
      %s168 = sadd.s32 %s167, 1
      %s169 = scalar_select %p166, %s167, %s168
      %p172 = pneg %p166
      %p173 = scmp.eq.s32.totalorder %s21, 1
      %p174 = por %p172, %p173
      %p175 = scmp.ne.s32.totalorder %s167, %s170
      %p176 = scmp.eq.s32.totalorder %s21, 0
      %p177 = por %p175, %p176
      %p178 = scmp.ne.s32.totalorder %s167, %s170
      %p179 = scmp.eq.s32.totalorder %s26, 1
      %p180 = por %p178, %p179
      %p181 = scmp.ne.s32.totalorder %s170, %s171
      %p182 = scmp.eq.s32.totalorder %s26, 0
      %p183 = por %p181, %p182
      %p184 = scmp.ne.s32.totalorder %s170, %s171
      %p185 = scmp.eq.s32.totalorder %s27, 1
      %p186 = por %p184, %p185
      %p188 = scmp.ne.s32.totalorder %s171, %s187
      %p189 = scmp.eq.s32.totalorder %s27, 0
      %p190 = por %p188, %p189
      %p191 = scmp.le.s32.totalorder 1, %s21
      %p192 = scmp.lt.s32.totalorder %s21, 3
      %p193 = pnand %p191, %p192
      %p194 = pneg %p193
      // Predicated region
      $region9: #{basic_block_forward.1} parent=5 // pred_check
        _
      $region10: #{basic_block_forward.1} parent=5 // pred_check_branch
        %196 = sbr.rel (%p193) target = $region12
      $region11: #{basic_block_forward.1} parent=5 // pred_region
        %s197 = ssub.s32 %s21, 1
        // Predicated region
        $region13: #{basic_block_forward.1} parent=11 // pred_check
          %p198 = pneg %p136
        $region14: #{basic_block_forward.1} parent=11 // pred_check_branch
          %200 = sbr.rel (%p198) target = $region16
        $region15: #{basic_block_forward.1} parent=11 // pred_region
          %202 = vsyncadd [#allocation10], 0
          %s203 = sshll.u32 %s3, 4
          %s204 = int_to_ptr.hbm [resolvable:$true] %s203
          %s205 = sshll.u32 [#allocation9], 4
          %s206 = int_to_ptr.vmem [resolvable:$true] %s205
          %211 = dma.hbm_to_vmem [thread:$0]  %s204, 1024, %s206, [#allocation10], 128, 128, 8
        $region16: #{basic_block_forward.1} parent=11 // pred_fallthru
          _
        // Predicated region
        $region17: #{basic_block_forward.1} parent=11 // pred_check
          %p212 = pneg %p157
        $region18: #{basic_block_forward.1} parent=11 // pred_check_branch
          %214 = sbr.rel (%p212) target = $region20
        $region19: #{basic_block_forward.1} parent=11 // pred_region
          _
        $region20: #{basic_block_forward.1} parent=11 // pred_fallthru
          _
      $region12: #{basic_block_forward.1} parent=5 // pred_fallthru
        _
      %p215 = scmp.lt.s32.totalorder %s21, 2
      // Predicated region
      $region21: #{basic_block_forward.1} parent=5 // pred_check
        %p216 = pneg %p215
      $region22: #{basic_block_forward.1} parent=5 // pred_check_branch
        %218 = sbr.rel (%p216) target = $region24
      $region23: #{basic_block_forward.1} parent=5 // pred_region
        // Predicated region
        $region25: #{basic_block_forward.1} parent=23 // pred_check
          %p219 = pneg %p53
        $region26: #{basic_block_forward.1} parent=23 // pred_check_branch
          %221 = sbr.rel (%p219) target = $region28
        $region27: #{basic_block_forward.1} parent=23 // pred_region
          %s222 = sand.u32 %s43, 1
          %s223 = scalar_lea.sflag [#allocation4], %s222
          %s224 = sand.u32 %s43, 1
          %s225 = smul.addr %s224, 16
          %s226 = scalar_lea.vmem [#allocation3], %s225
          %228 = vsyncadd %s223, 0
          %s229 = smul.addr %s28, 2
          %s230 = smul.addr %s229, 8
          %s231 = scalar_lea.hbm %s0, %s230
          %s232 = sshll.u32 %s231, 4
          %s233 = int_to_ptr.hbm [resolvable:$true] %s232
          %s234 = sshll.u32 %s226, 4
          %s235 = int_to_ptr.vmem [resolvable:$true] %s234
          %240 = dma.hbm_to_vmem [thread:$0]  %s233, 256, %s235, %s223, 128, 128, 8
        $region28: #{basic_block_forward.1} parent=23 // pred_fallthru
          _
        // Predicated region
        $region29: #{basic_block_forward.1} parent=23 // pred_check
          %p241 = pneg %p81
        $region30: #{basic_block_forward.1} parent=23 // pred_check_branch
          %243 = sbr.rel (%p241) target = $region32
        $region31: #{basic_block_forward.1} parent=23 // pred_region
          %s244 = sand.u32 %s21, 1
          %s245 = scalar_lea.sflag [#allocation7], %s244
          %s246 = sand.u32 %s71, 1
          %s247 = smul.addr %s246, 16
          %s248 = scalar_lea.vmem [#allocation6], %s247
          %s249 = smul.u32 2, %s29
          %251 = vsyncadd %s245, 0
          %s252 = smul.addr %s28, 2
          %s253 = sadd.s32 %s249, %s252
          %s254 = smul.addr %s253, 8
          %s255 = scalar_lea.hbm %s1, %s254
          %s256 = sshll.u32 %s255, 4
          %s257 = int_to_ptr.hbm [resolvable:$true] %s256
          %s258 = sshll.u32 %s248, 4
          %s259 = int_to_ptr.vmem [resolvable:$true] %s258
          %264 = dma.hbm_to_vmem [thread:$0]  %s257, 256, %s259, %s245, 128, 128, 8
        $region32: #{basic_block_forward.1} parent=23 // pred_fallthru
          _
        // Predicated region
        $region33: #{basic_block_forward.1} parent=23 // pred_check
          %p265 = pneg %p109
        $region34: #{basic_block_forward.1} parent=23 // pred_check_branch
          %267 = sbr.rel (%p265) target = $region36
        $region35: #{basic_block_forward.1} parent=23 // pred_region
          %s268 = sand.u32 %s21, 1
          %s269 = scalar_lea.sflag [#allocation7], %s268
          %s270 = sand.u32 %s99, 1
          %s271 = smul.addr %s270, 16
          %s272 = scalar_lea.vmem [#allocation8], %s271
          %274 = vsyncadd %s269, 0
          %s275 = smul.addr %s28, 2
          %s276 = sadd.s32 %s29, %s275
          %s277 = smul.addr %s276, 8
          %s278 = scalar_lea.hbm %s2, %s277
          %s279 = sshll.u32 %s278, 4
          %s280 = int_to_ptr.hbm [resolvable:$true] %s279
          %s281 = sshll.u32 %s272, 4
          %s282 = int_to_ptr.vmem [resolvable:$true] %s281
          %287 = dma.hbm_to_vmem [thread:$0]  %s280, 256, %s282, %s269, 128, 128, 8
        $region36: #{basic_block_forward.1} parent=23 // pred_fallthru
          _
      $region24: #{basic_block_forward.1} parent=5 // pred_fallthru
        _
      %p288 = scmp.le.s32.totalorder 1, %s21
      %p289 = scmp.lt.s32.totalorder %s21, 3
      %p290 = pnand %p288, %p289
      %p291 = pneg %p290
      // Predicated region
      $region37: #{basic_block_forward.1} parent=5 // pred_check
        _
      $region38: #{basic_block_forward.1} parent=5 // pred_check_branch
        %293 = sbr.rel (%p290) target = $region40
      $region39: #{basic_block_forward.1} parent=5 // pred_region
        %s294 = ssub.s32 %s21, 1
        %s295 = sand.u32 %s46, 1
        %s296 = scalar_lea.sflag [#allocation4], %s295
        %s297 = sand.u32 %s46, 1
        %s298 = smul.addr %s297, 16
        %s299 = scalar_lea.vmem [#allocation3], %s298
        // Predicated region
        $region41: #{basic_block_forward.1} parent=39 // pred_check
          %p300 = pneg %p59
        $region42: #{basic_block_forward.1} parent=39 // pred_check_branch
          %302 = sbr.rel (%p300) target = $region44
        $region43: #{basic_block_forward.1} parent=39 // pred_region
          %304 = dma.done %s296, 256
        $region44: #{basic_block_forward.1} parent=39 // pred_fallthru
          _
        %s305 = sand.u32 %s26, 1
        %s306 = scalar_lea.sflag [#allocation7], %s305
        %s307 = sand.u32 %s74, 1
        %s308 = smul.addr %s307, 16
        %s309 = scalar_lea.vmem [#allocation6], %s308
        // Predicated region
        $region45: #{basic_block_forward.1} parent=39 // pred_check
          %p310 = pneg %p87
        $region46: #{basic_block_forward.1} parent=39 // pred_check_branch
          %312 = sbr.rel (%p310) target = $region48
        $region47: #{basic_block_forward.1} parent=39 // pred_region
          %314 = dma.done %s306, 256
        $region48: #{basic_block_forward.1} parent=39 // pred_fallthru
          _
        %s315 = sand.u32 %s26, 1
        %s316 = scalar_lea.sflag [#allocation7], %s315
        %s317 = sand.u32 %s102, 1
        %s318 = smul.addr %s317, 16
        %s319 = scalar_lea.vmem [#allocation8], %s318
        // Predicated region
        $region49: #{basic_block_forward.1} parent=39 // pred_check
          %p320 = pneg %p115
        $region50: #{basic_block_forward.1} parent=39 // pred_check_branch
          %322 = sbr.rel (%p320) target = $region52
        $region51: #{basic_block_forward.1} parent=39 // pred_region
          %324 = dma.done %s316, 256
        $region52: #{basic_block_forward.1} parent=39 // pred_fallthru
          _
        // Predicated region
        $region53: #{basic_block_forward.1} parent=39 // pred_check
          %p325 = pneg %p136
        $region54: #{basic_block_forward.1} parent=39 // pred_check_branch
          %327 = sbr.rel (%p325) target = $region56
        $region55: #{basic_block_forward.1} parent=39 // pred_region
          %329 = dma.done [#allocation10], 1024
        $region56: #{basic_block_forward.1} parent=39 // pred_fallthru
          _
        %s330 = sand.u32 %s46, 1
        %s331 = scalar_lea.sflag [#allocation4], %s330
        %s332 = sand.u32 %s46, 1
        %s333 = smul.addr %s332, 16
        %s334 = scalar_lea.vmem [#allocation3], %s333
        %p335 = pneg %p59
        %p336 = pneg %p56
        %s337 = sand.u32 %s26, 1
        %s338 = scalar_lea.sflag [#allocation7], %s337
        %s339 = sand.u32 %s74, 1
        %s340 = smul.addr %s339, 16
        %s341 = scalar_lea.vmem [#allocation6], %s340
        %p342 = pneg %p87
        %p343 = pneg %p84
        %s344 = sand.u32 %s26, 1
        %s345 = scalar_lea.sflag [#allocation7], %s344
        %s346 = sand.u32 %s102, 1
        %s347 = smul.addr %s346, 16
        %s348 = scalar_lea.vmem [#allocation8], %s347
        %p349 = pneg %p115
        %p350 = pneg %p112
        %p351 = pneg %p136
        %p352 = pneg %p133
        %p353 = pneg %p157
        %p354 = pneg %p154
        %p355 = pneg %p183
        %p356 = pneg %p180
        %s357 = sand.u32 %s170, 1
        %s358 = scalar_lea.sflag [#allocation5], %s357
        %s359 = sand.u32 %s170, 1
        %s360 = smul.addr %s359, 16
        %s361 = scalar_lea.vmem [#allocation11], %s360
        %s362 = smul.u32 2, %s31
        %p363 = scmp.eq.s32.totalorder %s31, 0
        // Predicated region
        $region57: #{basic_block_forward.1} parent=39 // pred_check
          %p364 = pneg %p363
        $region58: #{basic_block_forward.1} parent=39 // pred_check_branch
          %366 = sbr.rel (%p364) target = $region60
        $region59: #{basic_block_forward.1} parent=39 // pred_region
          %vm367 = vcmask 261120
          %368 = vst.msk [vmem:[#allocation2] sm:$0xff] %vm367, 0.0
          %369 = vst.msk [vmem:[#allocation2 + $0x8] sm:$0xff] %vm367, 0.0
        $region60: #{basic_block_forward.1} parent=39 // pred_fallthru
          _
        %v370 = vld [vmem:[#allocation2] sm:$0xff]
        %v371 = vld [vmem:[#allocation2 + $0x8] sm:$0xff]
        %v372 = vld [vmem:[%s319] sm:$0xff]
        %v373 = vld [vmem:[%s319 + $0x8] sm:$0xff]
        %v374 = vld [vmem:[%s309] sm:$0xff]
        %v375 = vld [vmem:[%s309 + $0x8] sm:$0xff]
        %vm376 = vcmask 130048
        %v378 = vsel %vm376, %v372, 0
        %v381 = vsel %vm376, %v373, 0
        %383 = vmatpush.msra.mxu0 0.0
        %384 = vmatpush.msra.mxu0 0.0
        %385 = vmatpush.msra.mxu0 0.0
        %386 = vmatpush.msra.mxu0 0.0
        %387 = vmatpush.msra.mxu0 0.0
        %388 = vmatpush.msra.mxu0 0.0
        %389 = vmatpush.msra.mxu0 0.0
        %390 = vmatpush.msra.mxu0 0.0
        %391 = vmatpush.msra.mxu0 0.0
        %392 = vmatpush.msra.mxu0 0.0
        %393 = vmatpush.msra.mxu0 0.0
        %394 = vmatpush.msra.mxu0 0.0
        %395 = vmatpush.msra.mxu0 0.0
        %396 = vmatpush.msra.mxu0 0.0
        %397 = vmatpush.msra.mxu0 %v375
        %398 = vmatpush.msra.mxu0 %v374
        %399 = vmatmul.f32.gmra.mxu0 %v378
        %v400 = vpop.f32.mrf.mxu0
        %v401 = vadd.f32 0.0, %v400
        %402 = vmatmul.f32.gmra.mxu0 %v381
        %v403 = vpop.f32.mrf.mxu0
        %v404 = vadd.f32 0.0, %v403
        %405 = vdwg.mxu0
        %v406 = vadd.f32 %v370, %v401
        %v407 = vadd.f32 %v371, %v404
        %vm408 = vcmask 261120
        %409 = vst.msk [vmem:[#allocation2] sm:$0xff] %vm408, %v406
        %410 = vst.msk [vmem:[#allocation2 + $0x8] sm:$0xff] %vm408, %v407
        // Predicated region
        $region61: #{basic_block_forward.1} parent=39 // pred_check
          %p411 = pneg %p363
        $region62: #{basic_block_forward.1} parent=39 // pred_check_branch
          %413 = sbr.rel (%p411) target = $region64
        $region63: #{basic_block_forward.1} parent=39 // pred_region
          %v414 = vld [vmem:[%s299] sm:$0xff]
          %v415 = vld [vmem:[%s299 + $0x8] sm:$0xff]
          %v416 = vld [vmem:[#allocation2] sm:$0xff]
          %v417 = vld [vmem:[#allocation2 + $0x8] sm:$0xff]
          %v418 = vld [vmem:[#allocation9] sm:$0xff]
          %v419 = vld [vmem:[#allocation9 + $0x8] sm:$0xff]
          %v420 = vld [vmem:[#allocation9 + $0x10] sm:$0xff]
          %v421 = vld [vmem:[#allocation9 + $0x18] sm:$0xff]
          %v422 = vld [vmem:[#allocation9 + $0x20] sm:$0xff]
          %v423 = vld [vmem:[#allocation9 + $0x28] sm:$0xff]
          %v424 = vld [vmem:[#allocation9 + $0x30] sm:$0xff]
          %v425 = vld [vmem:[#allocation9 + $0x38] sm:$0xff]
          %v427 = vsel %vm408, %v416, 0
          %v430 = vsel %vm408, %v417, 0
          %432 = vmatpush.msra.mxu0 0.0
          %433 = vmatpush.msra.mxu0 0.0
          %434 = vmatpush.msra.mxu0 0.0
          %435 = vmatpush.msra.mxu0 0.0
          %436 = vmatpush.msra.mxu0 0.0
          %437 = vmatpush.msra.mxu0 0.0
          %438 = vmatpush.msra.mxu0 0.0
          %439 = vmatpush.msra.mxu0 0.0
          %440 = vmatpush.msra.mxu0 0.0
          %441 = vmatpush.msra.mxu0 0.0
          %442 = vmatpush.msra.mxu0 0.0
          %443 = vmatpush.msra.mxu0 0.0
          %444 = vmatpush.msra.mxu0 %v425
          %445 = vmatpush.msra.mxu0 %v424
          %446 = vmatpush.msra.mxu0 %v423
          %447 = vmatpush.msra.mxu0 %v422
          %448 = vmatmul.f32.gmra.mxu0 %v427
          %v449 = vpop.f32.mrf.mxu0
          %v450 = vadd.f32 0.0, %v449
          %451 = vmatmul.f32.gmra.mxu0 %v430
          %v452 = vpop.f32.mrf.mxu0
          %v453 = vadd.f32 0.0, %v452
          %454 = vdwg.mxu0
          %v456 = vsel %vm408, %v414, 0
          %v459 = vsel %vm408, %v415, 0
          %461 = vmatpush.msra.mxu0 0.0
          %462 = vmatpush.msra.mxu0 0.0
          %463 = vmatpush.msra.mxu0 0.0
          %464 = vmatpush.msra.mxu0 0.0
          %465 = vmatpush.msra.mxu0 0.0
          %466 = vmatpush.msra.mxu0 0.0
          %467 = vmatpush.msra.mxu0 0.0
          %468 = vmatpush.msra.mxu0 0.0
          %469 = vmatpush.msra.mxu0 0.0
          %470 = vmatpush.msra.mxu0 0.0
          %471 = vmatpush.msra.mxu0 0.0
          %472 = vmatpush.msra.mxu0 0.0
          %473 = vmatpush.msra.mxu0 %v421
          %474 = vmatpush.msra.mxu0 %v420
          %475 = vmatpush.msra.mxu0 %v419
          %476 = vmatpush.msra.mxu0 %v418
          %477 = vmatmul.f32.gmra.mxu0 %v456
          %v478 = vpop.f32.mrf.mxu0
          %v479 = vadd.f32 %v450, %v478
          %480 = vmatmul.f32.gmra.mxu0 %v459
          %v481 = vpop.f32.mrf.mxu0
          %v482 = vadd.f32 %v453, %v481
          %483 = vdwg.mxu0
          %v484 = vld [vmem:[%s4] sm:$0x1]
          %v486 = vperm.slane %v484, 0
          %v488 = vadd.f32 %v479, %v486
          %v489 = vadd.f32 %v482, %v486
          %v490 = vmax.f32 %v488, 0.0
          %v491 = vmax.f32 %v489, 0.0
          %492 = vst [vmem:[%s361] sm:$0xff] %v490
          %493 = vst [vmem:[%s361 + $0x8] sm:$0xff] %v491
        $region64: #{basic_block_forward.1} parent=39 // pred_fallthru
          _
        %s494 = sand.u32 %s170, 1
        %s495 = scalar_lea.sflag [#allocation5], %s494
        %s496 = sand.u32 %s170, 1
        %s497 = smul.addr %s496, 16
        %s498 = scalar_lea.vmem [#allocation11], %s497
        // Predicated region
        $region65: #{basic_block_forward.1} parent=39 // pred_check
          %p499 = pneg %p180
        $region66: #{basic_block_forward.1} parent=39 // pred_check_branch
          %501 = sbr.rel (%p499) target = $region68
        $region67: #{basic_block_forward.1} parent=39 // pred_region
          %503 = vsyncadd %s495, 0
          %s504 = smul.addr %s30, 2
          %s505 = smul.addr %s504, 8
          %s506 = scalar_lea.hbm %s5, %s505
          %s507 = sshll.u32 %s498, 4
          %s508 = int_to_ptr.vmem [resolvable:$true] %s507
          %s509 = sshll.u32 %s506, 4
          %s510 = int_to_ptr.hbm [resolvable:$true] %s509
          %515 = dma.vmem_to_hbm [thread:$0]  %s508, 256, %s510, %s495, 128, 128, 8
        $region68: #{basic_block_forward.1} parent=39 // pred_fallthru
          _
      $region40: #{basic_block_forward.1} parent=5 // pred_fallthru
        _
      %p516 = scmp.le.s32.totalorder 2, %s21
      // Predicated region
      $region69: #{basic_block_forward.1} parent=5 // pred_check
        %p517 = pneg %p516
      $region70: #{basic_block_forward.1} parent=5 // pred_check_branch
        %519 = sbr.rel (%p517) target = $region72
      $region71: #{basic_block_forward.1} parent=5 // pred_region
        %s520 = ssub.s32 %s21, 2
        // Predicated region
        $region73: #{basic_block_forward.1} parent=71 // pred_check
          %p521 = pneg %p186
        $region74: #{basic_block_forward.1} parent=71 // pred_check_branch
          %523 = sbr.rel (%p521) target = $region76
        $region75: #{basic_block_forward.1} parent=71 // pred_region
          %s524 = sand.u32 %s171, 1
          %s525 = scalar_lea.sflag [#allocation5], %s524
          %s526 = sand.u32 %s171, 1
          %s527 = smul.addr %s526, 16
          %s528 = scalar_lea.vmem [#allocation11], %s527
          %530 = dma.done %s525, 256
        $region76: #{basic_block_forward.1} parent=71 // pred_fallthru
          _
      $region72: #{basic_block_forward.1} parent=5 // pred_fallthru
        _
    $region6: #{basic_block_forward.1} parent=1 // loop_footer
      %s25 = sadd.s32 1, %s21
    $region7: #{basic_block_forward.1} parent=1 // loop_footer_branch
      %20 = sbr.rel target = $region3
    $region8: #{basic_block_forward.1} parent=1 // loop_exit
      _
    %531 = vsyncpa [#allocation4], 1
    %s532 = scalar_lea.sflag [#allocation4], 1
    %533 = vsyncpa %s532, 1
    %534 = vsyncpa [#allocation7], 1
    %s535 = scalar_lea.sflag [#allocation7], 1
    %536 = vsyncpa %s535, 1
    %537 = vsyncpa [#allocation10], 1
    %538 = vsyncpa [#allocation5], 1
    %s539 = scalar_lea.sflag [#allocation5], 1
    %540 = vsyncpa %s539, 1

</llo_original>
